<compile_context>
chip_gen: v7x
topology: tpu7x:2x2x1
jax: 0.10.0
libtpu: 0.0.40
codegen_flags: <defaults>
</compile_context>

<pallas_src>
import functools

import jax
import jax.numpy as jnp
from jax.experimental import pallas as pl
from jax.experimental.pallas import tpu as pltpu


HIDDEN1 = 512
HIDDEN2 = 128
MAX_ACTION = 0.5
LANE = 128

_VMEM_BUDGET = 24 * 1024 * 1024   # per-tile budget, safe for v7x (64 MiB VMEM)
_VMEM_LIMIT = 32 * 1024 * 1024    # raises v5e's 16 MiB default; = v6e/v7x default


def _round_up(x, m):
    return ((x + m - 1) // m) * m


def _cdiv(a, b):
    return -(-a // b)


def _policy_kernel(obs_ref, w1_ref, b1_ref, w2_ref, b2_ref, w3_ref, b3_ref,
                   out_ref):
    """One batch tile of the 3-layer MLP.

    obs_ref : [TB, obs_dim]  (streamed per grid step; f32 or bf16)
    w*_ref  : bf16 [in, out] weights, grid-invariant (resident across steps)
    b*_ref  : [1, out] f32 biases, grid-invariant
    out_ref : [TB, LANE_OUT] f32, lane-dense (action_dim zero-padded to 128)
    """
    # Layer 1: obs_dim -> 512.  bf16 MXU inputs, f32 accumulate; the
    # bias+ReLU+bf16 cast is fused so only the bf16 copy is kept around.
    x = obs_ref[...].astype(jnp.bfloat16)
    h1 = jnp.maximum(
        jnp.dot(x, w1_ref[...], preferred_element_type=jnp.float32)
        + b1_ref[...], 0.0).astype(jnp.bfloat16)

    # Layer 2: 512 -> 128.
    h2 = jnp.maximum(
        jnp.dot(h1, w2_ref[...], preferred_element_type=jnp.float32)
        + b2_ref[...], 0.0).astype(jnp.bfloat16)

    # Mean head: 128 -> 128 (action_dim zero-padded to full lanes); tanh (EUP).
    m = jnp.dot(h2, w3_ref[...], preferred_element_type=jnp.float32) + b3_ref[...]
    out_ref[...] = (jnp.tanh(m) * MAX_ACTION).astype(out_ref.dtype)


def _pick_tiling(batch, obs_dim, obs_bytes, lane_out, tb_max):
    """Choose (tile_b, n_tiles) such that:

    * per-tile VMEM footprint (double-buffered obs/out tiles, resident
      double-buffered weights, f32+bf16 intermediates) stays under ~24 MiB,
    * tile_b <= tb_max,
    * batch padding stays at a few rows (tile ~divides the 8-padded batch)
      instead of rounding the batch up to a whole tile,
    * the grid has >= 2 steps when there is enough work, so the "parallel"
      batch axis actually shards across v7x's two TensorCores.
    """
    padded8 = _round_up(max(batch, 1), 8)

    per_row = (2 * obs_dim * obs_bytes        # obs tile, double-buffered
               + 2 * lane_out * 4             # out tile, double-buffered f32
               + HIDDEN1 * (4 + 2)            # h1: f32 dot result + bf16 copy
               + HIDDEN2 * (4 + 2))           # h2: f32 dot result + bf16 copy
    weight_bytes = 2 * 2 * (obs_dim * HIDDEN1 + HIDDEN1 * HIDDEN2
                            + HIDDEN2 * lane_out)          # bf16, 2 buffers
    bias_bytes = 2 * 4 * (HIDDEN1 + HIDDEN2 + lane_out)
    avail = max(_VMEM_BUDGET - weight_bytes - bias_bytes, per_row * 8)
    tb_budget = max(8, (avail // per_row) // 8 * 8)

    tile_cap = min(tb_max, tb_budget, padded8)
    n_tiles = _cdiv(padded8, tile_cap)
    if n_tiles == 1 and padded8 >= 256:       # enough work for two TCs (v7x)
        n_tiles = 2
    tile_b = _round_up(_cdiv(padded8, n_tiles), 8)
    return tile_b, n_tiles


@functools.partial(jax.jit, static_argnames=("tb",))
def deterministic_policy_forward(obs, w1, b1, w2, b2, w3, b3, *, tb=1024):
    """obs: [B, obs_dim] (f32 or bf16) -> mean action: [B, action_dim] f32."""
    batch, obs_dim = obs.shape
    action_dim = w3.shape[1]
    lane_out = _round_up(max(action_dim, LANE), LANE)

    obs_bytes = jnp.dtype(obs.dtype).itemsize
    tile_b, n_tiles = _pick_tiling(batch, obs_dim, obs_bytes, lane_out, tb)
    padded_b = tile_b * n_tiles
    if padded_b != batch:
        obs = jnp.pad(obs, ((0, padded_b - batch), (0, 0)))

    # Lane-dense head: zero-pad action_dim out to 128 lanes (costs ~32 KiB of
    # bf16 weights; the extra MXU columns are free).
    if lane_out != action_dim:
        w3 = jnp.pad(w3, ((0, 0), (0, lane_out - action_dim)))
        b3 = jnp.pad(b3, ((0, 0), (0, lane_out - action_dim)))

    # Grid-invariant (resident) specs for weights/biases.
    # TODO(synk): mark these single-buffered (pipeline_mode=pl.Buffered(1)) to
    # reclaim the second weight buffer; the double-buffer cost is already
    # accounted for in _pick_tiling's VMEM budget, so this is only headroom.
    def resident(a):
        return pl.BlockSpec(a.shape, lambda i: (0,) * a.ndim)

    def nbytes(a):
        return a.size * jnp.dtype(a.dtype).itemsize

    flops = 2 * padded_b * (obs_dim * HIDDEN1
                            + HIDDEN1 * HIDDEN2
                            + HIDDEN2 * lane_out)
    bytes_accessed = (padded_b * obs_dim * obs_bytes
                      + nbytes(w1) + nbytes(w2) + nbytes(w3)
                      + nbytes(b1) + nbytes(b2) + nbytes(b3)
                      + padded_b * lane_out * 4)
    cost = pl.CostEstimate(flops=flops,
                           transcendentals=padded_b * lane_out,
                           bytes_accessed=bytes_accessed)

    out = pl.pallas_call(
        _policy_kernel,
        out_shape=jax.ShapeDtypeStruct((padded_b, lane_out), jnp.float32),
        grid=(n_tiles,),
        in_specs=[
            pl.BlockSpec((tile_b, obs_dim), lambda i: (i, 0)),   # streamed
            resident(w1), resident(b1),
            resident(w2), resident(b2),
            resident(w3), resident(b3),
        ],
        out_specs=pl.BlockSpec((tile_b, lane_out), lambda i: (i, 0)),
        compiler_params=pltpu.CompilerParams(
            dimension_semantics=("parallel",),
            vmem_limit_bytes=_VMEM_LIMIT),
        cost_estimate=cost,
    )(obs, w1, b1, w2, b2, w3, b3)

    return out[:batch, :action_dim]


def init_params(key, obs_dim, action_dim, init_w=3e-3):
    """Mirrors fanin_init / uniform(-init_w, init_w) from the PyTorch module.

    Weights are returned in [in, out] layout, bf16; biases f32 [1, out].
    """
    k1, k2, k3, kb1, kb2, kb3 = jax.random.split(key, 6)

    def fanin_uniform(k, in_dim, out_dim):
        v = 1.0 / jnp.sqrt(jnp.float32(in_dim))
        return jax.random.uniform(k, (in_dim, out_dim), jnp.float32, -v, v)

    w1 = fanin_uniform(k1, obs_dim, HIDDEN1).astype(jnp.bfloat16)
    w2 = fanin_uniform(k2, HIDDEN1, HIDDEN2).astype(jnp.bfloat16)
    w3 = jax.random.uniform(k3, (HIDDEN2, action_dim), jnp.float32,
                            -init_w, init_w).astype(jnp.bfloat16)

    def bias_uniform(k, fan_in, out_dim):
        v = 1.0 / jnp.sqrt(jnp.float32(fan_in))
        return jax.random.uniform(k, (1, out_dim), jnp.float32, -v, v)

    b1 = bias_uniform(kb1, obs_dim, HIDDEN1)
    b2 = bias_uniform(kb2, HIDDEN1, HIDDEN2)
    b3 = bias_uniform(kb3, HIDDEN2, action_dim)
    return w1, b1, w2, b2, w3, b3


def _reference_forward(obs, w1, b1, w2, b2, w3, b3):
    """Pure-JAX reference (weights upcast to f32; f32 activations)."""
    h1 = jnp.maximum(obs @ w1.astype(jnp.float32) + b1, 0.0)
    h2 = jnp.maximum(h1 @ w2.astype(jnp.float32) + b2, 0.0)
    return jnp.tanh(h2 @ w3.astype(jnp.float32) + b3) * MAX_ACTION


if __name__ == "__main__":
    key = jax.random.PRNGKey(0)
    k_obs, k_obs2, k_params = jax.random.split(key, 3)

    obs_dim = 16
    action_dim = 8
    params = init_params(k_params, obs_dim, action_dim)

    # Small primary check (single grid step).
    batch = 2
    obs = jax.random.normal(k_obs, (batch, obs_dim), jnp.float32)
    mean = jax.block_until_ready(deterministic_policy_forward(obs, *params))
    ref = _reference_forward(obs, *params)
    assert mean.shape == (batch, action_dim)
    # bf16 activations inside the kernel -> loose tolerance vs f32 reference.
    assert jnp.allclose(mean, ref, atol=2e-2, rtol=2e-2), "mismatch (small batch)"
    assert bool(jnp.all(jnp.abs(mean) <= MAX_ACTION + 1e-6)), "range violation"

    # Ragged / multi-tile check (2-step parallel grid, few-row padding path).
    batch2 = 300
    obs2 = jax.random.normal(k_obs2, (batch2, obs_dim), jnp.float32)
    mean2 = jax.block_until_ready(deterministic_policy_forward(obs2, *params))
    ref2 = _reference_forward(obs2, *params)
    assert mean2.shape == (batch2, action_dim)
    assert jnp.allclose(mean2, ref2, atol=2e-2, rtol=2e-2), "mismatch (multi-tile)"

    # TODO(synk): `sample()` adds clamped torch-native normal noise; RNG noise
    # injection is left outside the kernel (forward() semantics fully covered).
    print("KERNEL_OK")
</pallas_src>

<mosaic_0001>
module attributes {stable_mosaic.version = 11 : i64} {
  func.func @_policy_kernel(%arg0: i32, %arg1: memref<8x16xf32, #tpu.memory_space<vmem>>, %arg2: memref<16x512xbf16, #tpu.memory_space<vmem>>, %arg3: memref<1x512xf32, #tpu.memory_space<vmem>>, %arg4: memref<512x128xbf16, #tpu.memory_space<vmem>>, %arg5: memref<1x128xf32, #tpu.memory_space<vmem>>, %arg6: memref<128x128xbf16, #tpu.memory_space<vmem>>, %arg7: memref<1x128xf32, #tpu.memory_space<vmem>>, %arg8: memref<8x128xf32, #tpu.memory_space<vmem>>) attributes {dimension_semantics = [#tpu.dimension_semantics<parallel>], iteration_bounds = array<i64: 1>, scalar_prefetch = 0 : i64, scratch_operands = 0 : i64, tpu.core_type = #tpu.core_type<tc>, window_params = [{transform_indices = @transform_0, window_bounds = array<i64: 8, 16>}, {pipeline_mode = #tpu.pipeline_mode<synchronous>, transform_indices = @transform_1, window_bounds = array<i64: 16, 512>}, {pipeline_mode = #tpu.pipeline_mode<synchronous>, transform_indices = @transform_2, window_bounds = array<i64: 1, 512>}, {pipeline_mode = #tpu.pipeline_mode<synchronous>, transform_indices = @transform_3, window_bounds = array<i64: 512, 128>}, {pipeline_mode = #tpu.pipeline_mode<synchronous>, transform_indices = @transform_4, window_bounds = array<i64: 1, 128>}, {pipeline_mode = #tpu.pipeline_mode<synchronous>, transform_indices = @transform_5, window_bounds = array<i64: 128, 128>}, {pipeline_mode = #tpu.pipeline_mode<synchronous>, transform_indices = @transform_6, window_bounds = array<i64: 1, 128>}, {transform_indices = @transform_7, window_bounds = array<i64: 8, 128>}]} {
    %c0 = arith.constant 0 : index
    %c0_0 = arith.constant 0 : index
    %0 = vector.load %arg1[%c0, %c0_0] : memref<8x16xf32, #tpu.memory_space<vmem>>, vector<8x16xf32>
    %1 = arith.truncf %0 : vector<8x16xf32> to vector<8x16xbf16>
    %c0_1 = arith.constant 0 : index
    %c0_2 = arith.constant 0 : index
    %2 = vector.load %arg2[%c0_1, %c0_2] : memref<16x512xbf16, #tpu.memory_space<vmem>>, vector<16x512xbf16>
    %cst = arith.constant dense<0.000000e+00> : vector<8x512xf32>
    %3 = tpu.matmul %1, %2, %cst {dimension_numbers = #tpu.dot_dimension_numbers<[1], [0], [0], [1], [0, 0, 1, 1], [], []>} : vector<8x16xbf16>, vector<16x512xbf16>, vector<8x512xf32> -> vector<8x512xf32>
    %c0_3 = arith.constant 0 : index
    %c0_4 = arith.constant 0 : index
    %4 = vector.load %arg3[%c0_3, %c0_4] : memref<1x512xf32, #tpu.memory_space<vmem>>, vector<1x512xf32>
    %5 = vector.broadcast %4 : vector<1x512xf32> to vector<8x512xf32>
    %6 = arith.addf %3, %5 : vector<8x512xf32>
    %cst_5 = arith.constant 0.000000e+00 : f32
    %7 = vector.broadcast %cst_5 : f32 to vector<8x512xf32>
    %8 = arith.maximumf %6, %7 : vector<8x512xf32>
    %9 = arith.truncf %8 : vector<8x512xf32> to vector<8x512xbf16>
    %c0_6 = arith.constant 0 : index
    %c0_7 = arith.constant 0 : index
    %10 = vector.load %arg4[%c0_6, %c0_7] : memref<512x128xbf16, #tpu.memory_space<vmem>>, vector<512x128xbf16>
    %cst_8 = arith.constant dense<0.000000e+00> : vector<8x128xf32>
    %11 = tpu.matmul %9, %10, %cst_8 {dimension_numbers = #tpu.dot_dimension_numbers<[1], [0], [0], [1], [0, 0, 1, 1], [], []>} : vector<8x512xbf16>, vector<512x128xbf16>, vector<8x128xf32> -> vector<8x128xf32>
    %c0_9 = arith.constant 0 : index
    %c0_10 = arith.constant 0 : index
    %12 = vector.load %arg5[%c0_9, %c0_10] : memref<1x128xf32, #tpu.memory_space<vmem>>, vector<1x128xf32>
    %13 = vector.broadcast %12 : vector<1x128xf32> to vector<8x128xf32>
    %14 = arith.addf %11, %13 : vector<8x128xf32>
    %cst_11 = arith.constant 0.000000e+00 : f32
    %15 = vector.broadcast %cst_11 : f32 to vector<8x128xf32>
    %16 = arith.maximumf %14, %15 : vector<8x128xf32>
    %17 = arith.truncf %16 : vector<8x128xf32> to vector<8x128xbf16>
    %c0_12 = arith.constant 0 : index
    %c0_13 = arith.constant 0 : index
    %18 = vector.load %arg6[%c0_12, %c0_13] : memref<128x128xbf16, #tpu.memory_space<vmem>>, vector<128x128xbf16>
    %cst_14 = arith.constant dense<0.000000e+00> : vector<8x128xf32>
    %19 = tpu.matmul %17, %18, %cst_14 {dimension_numbers = #tpu.dot_dimension_numbers<[1], [0], [0], [1], [0, 0, 1, 1], [], []>} : vector<8x128xbf16>, vector<128x128xbf16>, vector<8x128xf32> -> vector<8x128xf32>
    %c0_15 = arith.constant 0 : index
    %c0_16 = arith.constant 0 : index
    %20 = vector.load %arg7[%c0_15, %c0_16] : memref<1x128xf32, #tpu.memory_space<vmem>>, vector<1x128xf32>
    %21 = vector.broadcast %20 : vector<1x128xf32> to vector<8x128xf32>
    %22 = arith.addf %19, %21 : vector<8x128xf32>
    %23 = math.tanh %22 : vector<8x128xf32>
    %cst_17 = arith.constant 5.000000e-01 : f32
    %24 = vector.broadcast %cst_17 : f32 to vector<8x128xf32>
    %25 = arith.mulf %23, %24 : vector<8x128xf32>
    %c0_18 = arith.constant 0 : index
    %c0_19 = arith.constant 0 : index
    %26 = vector.load %arg8[%c0_18, %c0_19] : memref<8x128xf32, #tpu.memory_space<vmem>>, vector<8x128xf32>
    tpu.vector_store %arg8[%c0_18, %c0_19], %25 {strides = array<i32>} : memref<8x128xf32, #tpu.memory_space<vmem>>, vector<8x128xf32>,
    return
  }
  func.func @transform_0(%arg0: i32) -> (i32, i32) {
    %c0_i32 = arith.constant 0 : i32
    %c0_i32_0 = arith.constant 0 : i32
    return %arg0, %c0_i32 : i32, i32
  }
  func.func @transform_1(%arg0: i32) -> (i32, i32) {
    %c0_i32 = arith.constant 0 : i32
    %c0_i32_0 = arith.constant 0 : i32
    %c0_i32_1 = arith.constant 0 : i32
    return %c0_i32, %c0_i32_0 : i32, i32
  }
  func.func @transform_2(%arg0: i32) -> (i32, i32) {
    %c0_i32 = arith.constant 0 : i32
    %c0_i32_0 = arith.constant 0 : i32
    %c0_i32_1 = arith.constant 0 : i32
    return %c0_i32, %c0_i32_0 : i32, i32
  }
  func.func @transform_3(%arg0: i32) -> (i32, i32) {
    %c0_i32 = arith.constant 0 : i32
    %c0_i32_0 = arith.constant 0 : i32
    %c0_i32_1 = arith.constant 0 : i32
    return %c0_i32, %c0_i32_0 : i32, i32
  }
  func.func @transform_4(%arg0: i32) -> (i32, i32) {
    %c0_i32 = arith.constant 0 : i32
    %c0_i32_0 = arith.constant 0 : i32
    %c0_i32_1 = arith.constant 0 : i32
    return %c0_i32, %c0_i32_0 : i32, i32
  }
  func.func @transform_5(%arg0: i32) -> (i32, i32) {
    %c0_i32 = arith.constant 0 : i32
    %c0_i32_0 = arith.constant 0 : i32
    %c0_i32_1 = arith.constant 0 : i32
    return %c0_i32, %c0_i32_0 : i32, i32
  }
  func.func @transform_6(%arg0: i32) -> (i32, i32) {
    %c0_i32 = arith.constant 0 : i32
    %c0_i32_0 = arith.constant 0 : i32
    %c0_i32_1 = arith.constant 0 : i32
    return %c0_i32, %c0_i32_0 : i32, i32
  }
  func.func @transform_7(%arg0: i32) -> (i32, i32) {
    %c0_i32 = arith.constant 0 : i32
    %c0_i32_0 = arith.constant 0 : i32
    return %arg0, %c0_i32 : i32, i32
  }
}

</mosaic_0001>

<llo_original>
// kernel: deterministic_policy_forward.1
$region0: #{deterministic_policy_forward.1}
  #allocation0 [shape = 'u32[]', space=smem, size = 0x4, offset = 0x4, fixed_abs, tag = 'smem constant byte address 0x4 - core index']
  #allocation1 [shape = 'u32[144,128]{1,0:T(1,128)}', space=vmem, size = 0x12000, scoped, tag = 'internal scratch']
  %s0 = inlined_call_operand.vmem [shape: f32[8,16], index: 0, kind: input, shape index: {}]
  %s1 = inlined_call_operand.vmem [shape: bf16[16,512], index: 1, kind: input, shape index: {}]
  %s2 = inlined_call_operand.vmem [shape: f32[1,512], index: 2, kind: input, shape index: {}]
  %s3 = inlined_call_operand.hbm [shape: bf16[512,128], index: 3, kind: input, shape index: {}]
  %s4 = inlined_call_operand.vmem [shape: f32[1,128], index: 4, kind: input, shape index: {}]
  %s5 = inlined_call_operand.vmem [shape: bf16[128,128], index: 5, kind: input, shape index: {}]
  %s6 = inlined_call_operand.vmem [shape: f32[1,128], index: 6, kind: input, shape index: {}]
  %s7 = inlined_call_operand.vmem [shape: f32[8,128], index: 7, kind: output, shape index: {}]
  %s8 = sld [smem:[#allocation0]]
  $region42: #{deterministic_policy_forward.1} parent=0
    _
  %s10 = ssub.s32 1, %s8
  %s11 = scalar_select 0, %s10, %s8
  $region1: #{deterministic_policy_forward.1} parent=0
    #allocation2 [shape = 'u8[131072]{0}', space=vmem, size = 0x20000, scoped, tag = 'input window, operand 3, single buffered']
    #allocation3 [shape = 's32[1]{0}', space=sflag, size = 0x4, scoped, tag = 'scoped memory for deterministic_policy_forward.1']
    %12 = vsyncpa [#allocation3], 0
    // Predicated region
    $region2: #{deterministic_policy_forward.1} parent=1 // pred_check
      _
    $region3: #{deterministic_policy_forward.1} parent=1 // pred_check_branch
      %14 = sbr.rel (0) target = $region5
    $region4: #{deterministic_policy_forward.1} parent=1 // pred_region
      _
    $region5: #{deterministic_policy_forward.1} parent=1 // pred_fallthru
      _
    // Predicated region
    $region6: #{deterministic_policy_forward.1} parent=1 // pred_check
      _
    $region7: #{deterministic_policy_forward.1} parent=1 // pred_check_branch
      %16 = sbr.rel (0) target = $region9
    $region8: #{deterministic_policy_forward.1} parent=1 // pred_region
      _
    $region9: #{deterministic_policy_forward.1} parent=1 // pred_fallthru
      _
    // Predicated region
    $region10: #{deterministic_policy_forward.1} parent=1 // pred_check
      _
    $region11: #{deterministic_policy_forward.1} parent=1 // pred_check_branch
      %18 = sbr.rel (0) target = $region13
    $region12: #{deterministic_policy_forward.1} parent=1 // pred_region
      _
    $region13: #{deterministic_policy_forward.1} parent=1 // pred_fallthru
      _
    // Predicated region
    $region14: #{deterministic_policy_forward.1} parent=1 // pred_check
      _
    $region15: #{deterministic_policy_forward.1} parent=1 // pred_check_branch
      %20 = sbr.rel (0) target = $region17
    $region16: #{deterministic_policy_forward.1} parent=1 // pred_region
      %s22 = ssub.s32 4096, 4096
      %23 = vsyncadd [#allocation3], %s22
      %s24 = sshll.u32 [#allocation2], 4
      %s25 = int_to_ptr.vmem [resolvable:$true] %s24
      %30 = dma.hbm_to_vmem [thread:$0]  %s3, 4096, %s25, [#allocation3], 64, 64, 4
    $region17: #{deterministic_policy_forward.1} parent=1 // pred_fallthru
      _
    // Predicated region
    $region18: #{deterministic_policy_forward.1} parent=1 // pred_check
      _
    $region19: #{deterministic_policy_forward.1} parent=1 // pred_check_branch
      %32 = sbr.rel (0) target = $region21
    $region20: #{deterministic_policy_forward.1} parent=1 // pred_region
      _
    $region21: #{deterministic_policy_forward.1} parent=1 // pred_fallthru
      _
    // Predicated region
    $region22: #{deterministic_policy_forward.1} parent=1 // pred_check
      _
    $region23: #{deterministic_policy_forward.1} parent=1 // pred_check_branch
      %34 = sbr.rel (0) target = $region25
    $region24: #{deterministic_policy_forward.1} parent=1 // pred_region
      _
    $region25: #{deterministic_policy_forward.1} parent=1 // pred_fallthru
      _
    // Predicated region
    $region26: #{deterministic_policy_forward.1} parent=1 // pred_check
      _
    $region27: #{deterministic_policy_forward.1} parent=1 // pred_check_branch
      %36 = sbr.rel (0) target = $region29
    $region28: #{deterministic_policy_forward.1} parent=1 // pred_region
      _
    $region29: #{deterministic_policy_forward.1} parent=1 // pred_fallthru
      _
    // Predicated region
    $region30: #{deterministic_policy_forward.1} parent=1 // pred_check
      _
    $region31: #{deterministic_policy_forward.1} parent=1 // pred_check_branch
      %38 = sbr.rel (0) target = $region33
    $region32: #{deterministic_policy_forward.1} parent=1 // pred_region
      %39 = dma.done [#allocation3], 4096
    $region33: #{deterministic_policy_forward.1} parent=1 // pred_fallthru
      _
    %v41 = vld [vmem:[%s0] sm:$0xff]
    %v42 = vpack.c.bf16 %v41, %v41
    %v43 = vld [vmem:[%s1] sm:$0xff]
    %v44 = vld [vmem:[%s1 + $0x8] sm:$0xff]
    %v45 = vld [vmem:[%s1 + $0x10] sm:$0xff]
    %v46 = vld [vmem:[%s1 + $0x18] sm:$0xff]
    %v47 = vld [vmem:[%s2] sm:$0xf]
    %v49 = vlaneseq
    %v50 = vshrl.u32 %v49, 7
    %v51 = vsub.s32 0, %v50
    %v52 = vrot.slane %v47, %v51
    %v53 = vlaneseq
    %v54 = vshrl.u32 %v53, 7
    %v55 = vsub.s32 1, %v54
    %v56 = vrot.slane %v47, %v55
    %v57 = vlaneseq
    %v58 = vshrl.u32 %v57, 7
    %v59 = vsub.s32 2, %v58
    %v60 = vrot.slane %v47, %v59
    %v61 = vlaneseq
    %v62 = vshrl.u32 %v61, 7
    %v63 = vsub.s32 3, %v62
    %v64 = vrot.slane %v47, %v63
    %v73 = vunpack.c.l.b16 %v43
    %v74 = vunpack.c.h.b16 %v43
    %v75 = vunpack.c.l.b16 %v44
    %v76 = vunpack.c.h.b16 %v44
    %v77 = vunpack.c.l.b16 %v45
    %v78 = vunpack.c.h.b16 %v45
    %v79 = vunpack.c.l.b16 %v46
    %v80 = vunpack.c.h.b16 %v46
    %v81 = vpack.c.b16 %v77, %v73
    %v82 = vpack.c.b16 %v78, %v74
    %v83 = vpack.c.b16 %v79, %v75
    %v84 = vpack.c.b16 %v80, %v76
    %vm89 = vcmask 130048
    %v91 = vsel %vm89, %v42, 0
    %93 = vmatprep.subr.bf16.mxu0 %v82
    %94 = vmatpush1.bf16.msra.mxu0 %v81
    %95 = vmatprep.subr.bf16.mxu0 0
    %96 = vmatpush1.bf16.msra.mxu0 0
    %97 = vmatprep.subr.bf16.mxu0 0
    %98 = vmatpush1.bf16.msra.mxu0 0
    %99 = vmatprep.subr.bf16.mxu0 0
    %100 = vmatpush1.bf16.msra.mxu0 0
    %101 = vmatprep.subr.bf16.mxu0 0
    %102 = vmatpush1.bf16.msra.mxu0 0
    %103 = vmatprep.subr.bf16.mxu0 0
    %104 = vmatpush1.bf16.msra.mxu0 0
    %105 = vmatprep.subr.bf16.mxu0 0
    %106 = vmatpush1.bf16.msra.mxu0 0
    %107 = vmatprep.subr.bf16.mxu0 0
    %108 = vmatpush1.bf16.msra.mxu0 0
    %109 = vmatprep.subr.bf16.mxu0 0
    %110 = vmatpush1.bf16.msra.mxu0 0
    %111 = vmatprep.subr.bf16.mxu0 0
    %112 = vmatpush1.bf16.msra.mxu0 0
    %113 = vmatprep.subr.bf16.mxu0 0
    %114 = vmatpush1.bf16.msra.mxu0 0
    %115 = vmatprep.subr.bf16.mxu0 0
    %116 = vmatpush1.bf16.msra.mxu0 0
    %117 = vmatprep.subr.bf16.mxu0 0
    %118 = vmatpush1.bf16.msra.mxu0 0
    %119 = vmatprep.subr.bf16.mxu0 0
    %120 = vmatpush1.bf16.msra.mxu0 0
    %121 = vmatprep.subr.bf16.mxu0 0
    %122 = vmatpush1.bf16.msra.mxu0 0
    %123 = vmatprep.subr.bf16.mxu0 0
    %124 = vmatpush1.bf16.msra.mxu0 0
    %125 = vmatprep.mubr.bf16.mxu0 0
    %126 = vmatmul.mubr.bf16.gmra.mrb[0].mxu0 %v91
    %v127 = vpop.f32.mrb[0].mxu0
    %v128 = vadd.f32 %v52, %v127
    %v129 = vpop.f32.mrb[0].mxu0
    %v130 = vadd.f32 %v56, %v129
    %v131 = vpop.f32.mrb[0].mxu0
    %v132 = vpop.f32.mrb[0].mxu0
    %133 = vdwg.mxu0
    %134 = vmatprep.subr.bf16.mxu0 %v84
    %135 = vmatpush1.bf16.msra.mxu0 %v83
    %136 = vmatprep.subr.bf16.mxu0 0
    %137 = vmatpush1.bf16.msra.mxu0 0
    %138 = vmatprep.subr.bf16.mxu0 0
    %139 = vmatpush1.bf16.msra.mxu0 0
    %140 = vmatprep.subr.bf16.mxu0 0
    %141 = vmatpush1.bf16.msra.mxu0 0
    %142 = vmatprep.subr.bf16.mxu0 0
    %143 = vmatpush1.bf16.msra.mxu0 0
    %144 = vmatprep.subr.bf16.mxu0 0
    %145 = vmatpush1.bf16.msra.mxu0 0
    %146 = vmatprep.subr.bf16.mxu0 0
    %147 = vmatpush1.bf16.msra.mxu0 0
    %148 = vmatprep.subr.bf16.mxu0 0
    %149 = vmatpush1.bf16.msra.mxu0 0
    %150 = vmatprep.subr.bf16.mxu0 0
    %151 = vmatpush1.bf16.msra.mxu0 0
    %152 = vmatprep.subr.bf16.mxu0 0
    %153 = vmatpush1.bf16.msra.mxu0 0
    %154 = vmatprep.subr.bf16.mxu0 0
    %155 = vmatpush1.bf16.msra.mxu0 0
    %156 = vmatprep.subr.bf16.mxu0 0
    %157 = vmatpush1.bf16.msra.mxu0 0
    %158 = vmatprep.subr.bf16.mxu0 0
    %159 = vmatpush1.bf16.msra.mxu0 0
    %160 = vmatprep.subr.bf16.mxu0 0
    %161 = vmatpush1.bf16.msra.mxu0 0
    %162 = vmatprep.subr.bf16.mxu0 0
    %163 = vmatpush1.bf16.msra.mxu0 0
    %164 = vmatprep.subr.bf16.mxu0 0
    %165 = vmatpush1.bf16.msra.mxu0 0
    %166 = vmatprep.mubr.bf16.mxu0 0
    %167 = vmatmul.mubr.bf16.gmra.mrb[0].mxu0 %v91
    %v168 = vpop.f32.mrb[0].mxu0
    %v169 = vadd.f32 %v60, %v168
    %v170 = vpop.f32.mrb[0].mxu0
    %v171 = vadd.f32 %v64, %v170
    %v172 = vpop.f32.mrb[0].mxu0
    %v173 = vpop.f32.mrb[0].mxu0
    %174 = vdwg.mxu0
    %v175 = vmax.f32 %v128, 0.0
    %v176 = vmax.f32 %v130, 0.0
    %v177 = vmax.f32 %v169, 0.0
    %v178 = vmax.f32 %v171, 0.0
    %v179 = vpack.c.bf16 %v175, %v175
    %v180 = vpack.c.bf16 %v176, %v176
    %v181 = vpack.c.bf16 %v177, %v177
    %v182 = vpack.c.bf16 %v178, %v178
    %v183 = vld [vmem:[#allocation2] sm:$0xf]
    %v184 = vld [vmem:[#allocation2 + $0x4] sm:$0xf]
    %v185 = vld [vmem:[#allocation2 + $0x8] sm:$0xf]
    %v186 = vld [vmem:[#allocation2 + $0xc] sm:$0xf]
    %v187 = vld [vmem:[#allocation2 + $0x10] sm:$0xf]
    %v188 = vld [vmem:[#allocation2 + $0x14] sm:$0xf]
    %v189 = vld [vmem:[#allocation2 + $0x18] sm:$0xf]
    %v190 = vld [vmem:[#allocation2 + $0x1c] sm:$0xf]
    %v191 = vld [vmem:[#allocation2 + $0x20] sm:$0xf]
    %v192 = vld [vmem:[#allocation2 + $0x24] sm:$0xf]
    %v193 = vld [vmem:[#allocation2 + $0x28] sm:$0xf]
    %v194 = vld [vmem:[#allocation2 + $0x2c] sm:$0xf]
    %v195 = vld [vmem:[#allocation2 + $0x30] sm:$0xf]
    %v196 = vld [vmem:[#allocation2 + $0x34] sm:$0xf]
    %v197 = vld [vmem:[#allocation2 + $0x38] sm:$0xf]
    %v198 = vld [vmem:[#allocation2 + $0x3c] sm:$0xf]
    %v199 = vld [vmem:[#allocation2 + $0x40] sm:$0xf]
    %v200 = vld [vmem:[#allocation2 + $0x44] sm:$0xf]
    %v201 = vld [vmem:[#allocation2 + $0x48] sm:$0xf]
    %v202 = vld [vmem:[#allocation2 + $0x4c] sm:$0xf]
    %v203 = vld [vmem:[#allocation2 + $0x50] sm:$0xf]
    %v204 = vld [vmem:[#allocation2 + $0x54] sm:$0xf]
    %v205 = vld [vmem:[#allocation2 + $0x58] sm:$0xf]
    %v206 = vld [vmem:[#allocation2 + $0x5c] sm:$0xf]
    %v207 = vld [vmem:[#allocation2 + $0x60] sm:$0xf]
    %v208 = vld [vmem:[#allocation2 + $0x64] sm:$0xf]
    %v209 = vld [vmem:[#allocation2 + $0x68] sm:$0xf]
    %v210 = vld [vmem:[#allocation2 + $0x6c] sm:$0xf]
    %v211 = vld [vmem:[#allocation2 + $0x70] sm:$0xf]
    %v212 = vld [vmem:[#allocation2 + $0x74] sm:$0xf]
    %v213 = vld [vmem:[#allocation2 + $0x78] sm:$0xf]
    %v214 = vld [vmem:[#allocation2 + $0x7c] sm:$0xf]
    %v215 = vld [vmem:[#allocation2 + $0x80] sm:$0xf]
    %v216 = vld [vmem:[#allocation2 + $0x84] sm:$0xf]
    %v217 = vld [vmem:[#allocation2 + $0x88] sm:$0xf]
    %v218 = vld [vmem:[#allocation2 + $0x8c] sm:$0xf]
    %v219 = vld [vmem:[#allocation2 + $0x90] sm:$0xf]
    %v220 = vld [vmem:[#allocation2 + $0x94] sm:$0xf]
    %v221 = vld [vmem:[#allocation2 + $0x98] sm:$0xf]
    %v222 = vld [vmem:[#allocation2 + $0x9c] sm:$0xf]
    %v223 = vld [vmem:[#allocation2 + $0xa0] sm:$0xf]
    %v224 = vld [vmem:[#allocation2 + $0xa4] sm:$0xf]
    %v225 = vld [vmem:[#allocation2 + $0xa8] sm:$0xf]
    %v226 = vld [vmem:[#allocation2 + $0xac] sm:$0xf]
    %v227 = vld [vmem:[#allocation2 + $0xb0] sm:$0xf]
    %v228 = vld [vmem:[#allocation2 + $0xb4] sm:$0xf]
    %v229 = vld [vmem:[#allocation2 + $0xb8] sm:$0xf]
    %v230 = vld [vmem:[#allocation2 + $0xbc] sm:$0xf]
    %v231 = vld [vmem:[#allocation2 + $0xc0] sm:$0xf]
    %v232 = vld [vmem:[#allocation2 + $0xc4] sm:$0xf]
    %v233 = vld [vmem:[#allocation2 + $0xc8] sm:$0xf]
    %v234 = vld [vmem:[#allocation2 + $0xcc] sm:$0xf]
    %v235 = vld [vmem:[#allocation2 + $0xd0] sm:$0xf]
    %v236 = vld [vmem:[#allocation2 + $0xd4] sm:$0xf]
    %v237 = vld [vmem:[#allocation2 + $0xd8] sm:$0xf]
    %v238 = vld [vmem:[#allocation2 + $0xdc] sm:$0xf]
    %v239 = vld [vmem:[#allocation2 + $0xe0] sm:$0xf]
    %v240 = vld [vmem:[#allocation2 + $0xe4] sm:$0xf]
    %v241 = vld [vmem:[#allocation2 + $0xe8] sm:$0xf]
    %v242 = vld [vmem:[#allocation2 + $0xec] sm:$0xf]
    %v243 = vld [vmem:[#allocation2 + $0xf0] sm:$0xf]
    %v244 = vld [vmem:[#allocation2 + $0xf4] sm:$0xf]
    %v245 = vld [vmem:[#allocation2 + $0xf8] sm:$0xf]
    %v246 = vld [vmem:[#allocation2 + $0xfc] sm:$0xf]
    %v247 = vld [vmem:[%s4] sm:$0x1]
    %v249 = vlaneseq
    %v250 = vshrl.u32 %v249, 7
    %v251 = vsub.s32 0, %v250
    %v252 = vrot.slane %v247, %v251
    %v318 = vunpack.c.l.b16 %v183
    %v319 = vunpack.c.l.b16 %v184
    %v320 = vunpack.c.l.b16 %v185
    %v321 = vunpack.c.l.b16 %v186
    %v322 = vunpack.c.l.b16 %v187
    %v323 = vunpack.c.l.b16 %v188
    %v324 = vunpack.c.l.b16 %v189
    %v325 = vunpack.c.l.b16 %v190
    %v326 = vunpack.c.l.b16 %v191
    %v327 = vunpack.c.l.b16 %v192
    %v328 = vunpack.c.l.b16 %v193
    %v329 = vunpack.c.l.b16 %v194
    %v330 = vunpack.c.l.b16 %v195
    %v331 = vunpack.c.l.b16 %v196
    %v332 = vunpack.c.l.b16 %v197
    %v333 = vunpack.c.l.b16 %v198
    %v334 = vunpack.c.l.b16 %v199
    %v335 = vunpack.c.l.b16 %v200
    %v336 = vunpack.c.l.b16 %v201
    %v337 = vunpack.c.l.b16 %v202
    %v338 = vunpack.c.l.b16 %v203
    %v339 = vunpack.c.l.b16 %v204
    %v340 = vunpack.c.l.b16 %v205
    %v341 = vunpack.c.l.b16 %v206
    %v342 = vunpack.c.l.b16 %v207
    %v343 = vunpack.c.l.b16 %v208
    %v344 = vunpack.c.l.b16 %v209
    %v345 = vunpack.c.l.b16 %v210
    %v346 = vunpack.c.l.b16 %v211
    %v347 = vunpack.c.l.b16 %v212
    %v348 = vunpack.c.l.b16 %v213
    %v349 = vunpack.c.l.b16 %v214
    %v350 = vunpack.c.l.b16 %v215
    %v351 = vunpack.c.l.b16 %v216
    %v352 = vunpack.c.l.b16 %v217
    %v353 = vunpack.c.l.b16 %v218
    %v354 = vunpack.c.l.b16 %v219
    %v355 = vunpack.c.l.b16 %v220
    %v356 = vunpack.c.l.b16 %v221
    %v357 = vunpack.c.l.b16 %v222
    %v358 = vunpack.c.l.b16 %v223
    %v359 = vunpack.c.l.b16 %v224
    %v360 = vunpack.c.l.b16 %v225
    %v361 = vunpack.c.l.b16 %v226
    %v362 = vunpack.c.l.b16 %v227
    %v363 = vunpack.c.l.b16 %v228
    %v364 = vunpack.c.l.b16 %v229
    %v365 = vunpack.c.l.b16 %v230
    %v366 = vunpack.c.l.b16 %v231
    %v367 = vunpack.c.l.b16 %v232
    %v368 = vunpack.c.l.b16 %v233
    %v369 = vunpack.c.l.b16 %v234
    %v370 = vunpack.c.l.b16 %v235
    %v371 = vunpack.c.l.b16 %v236
    %v372 = vunpack.c.l.b16 %v237
    %v373 = vunpack.c.l.b16 %v238
    %v374 = vunpack.c.l.b16 %v239
    %v375 = vunpack.c.l.b16 %v240
    %v376 = vunpack.c.l.b16 %v241
    %v377 = vunpack.c.l.b16 %v242
    %v378 = vunpack.c.l.b16 %v243
    %v379 = vunpack.c.l.b16 %v244
    %v380 = vunpack.c.l.b16 %v245
    %v381 = vunpack.c.l.b16 %v246
    %v382 = vpack.c.b16 %v319, %v318
    %v383 = vpack.c.b16 %v321, %v320
    %v384 = vpack.c.b16 %v323, %v322
    %v385 = vpack.c.b16 %v325, %v324
    %v386 = vpack.c.b16 %v327, %v326
    %v387 = vpack.c.b16 %v329, %v328
    %v388 = vpack.c.b16 %v331, %v330
    %v389 = vpack.c.b16 %v333, %v332
    %v390 = vpack.c.b16 %v335, %v334
    %v391 = vpack.c.b16 %v337, %v336
    %v392 = vpack.c.b16 %v339, %v338
    %v393 = vpack.c.b16 %v341, %v340
    %v394 = vpack.c.b16 %v343, %v342
    %v395 = vpack.c.b16 %v345, %v344
    %v396 = vpack.c.b16 %v347, %v346
    %v397 = vpack.c.b16 %v349, %v348
    %v398 = vpack.c.b16 %v351, %v350
    %v399 = vpack.c.b16 %v353, %v352
    %v400 = vpack.c.b16 %v355, %v354
    %v401 = vpack.c.b16 %v357, %v356
    %v402 = vpack.c.b16 %v359, %v358
    %v403 = vpack.c.b16 %v361, %v360
    %v404 = vpack.c.b16 %v363, %v362
    %v405 = vpack.c.b16 %v365, %v364
    %v406 = vpack.c.b16 %v367, %v366
    %v407 = vpack.c.b16 %v369, %v368
    %v408 = vpack.c.b16 %v371, %v370
    %v409 = vpack.c.b16 %v373, %v372
    %v410 = vpack.c.b16 %v375, %v374
    %v411 = vpack.c.b16 %v377, %v376
    %v412 = vpack.c.b16 %v379, %v378
    %v413 = vpack.c.b16 %v381, %v380
    %446 = vmatprep.subr.bf16.mxu0 0
    %447 = vmatpush1.bf16.msra.mxu0 %v382
    %448 = vmatprep.subr.bf16.mxu0 0
    %449 = vmatpush1.bf16.msra.mxu0 %v383
    %450 = vmatprep.subr.bf16.mxu0 0
    %451 = vmatpush1.bf16.msra.mxu0 %v384
    %452 = vmatprep.subr.bf16.mxu0 0
    %453 = vmatpush1.bf16.msra.mxu0 %v385
    %454 = vmatprep.subr.bf16.mxu0 0
    %455 = vmatpush1.bf16.msra.mxu0 %v386
    %456 = vmatprep.subr.bf16.mxu0 0
    %457 = vmatpush1.bf16.msra.mxu0 %v387
    %458 = vmatprep.subr.bf16.mxu0 0
    %459 = vmatpush1.bf16.msra.mxu0 %v388
    %460 = vmatprep.subr.bf16.mxu0 0
    %461 = vmatpush1.bf16.msra.mxu0 %v389
    %462 = vmatprep.subr.bf16.mxu0 0
    %463 = vmatpush1.bf16.msra.mxu0 %v390
    %464 = vmatprep.subr.bf16.mxu0 0
    %465 = vmatpush1.bf16.msra.mxu0 %v391
    %466 = vmatprep.subr.bf16.mxu0 0
    %467 = vmatpush1.bf16.msra.mxu0 %v392
    %468 = vmatprep.subr.bf16.mxu0 0
    %469 = vmatpush1.bf16.msra.mxu0 %v393
    %470 = vmatprep.subr.bf16.mxu0 0
    %471 = vmatpush1.bf16.msra.mxu0 %v394
    %472 = vmatprep.subr.bf16.mxu0 0
    %473 = vmatpush1.bf16.msra.mxu0 %v395
    %474 = vmatprep.subr.bf16.mxu0 0
    %475 = vmatpush1.bf16.msra.mxu0 %v396
    %476 = vmatprep.subr.bf16.mxu0 0
    %477 = vmatpush1.bf16.msra.mxu0 %v397
    %478 = vmatprep.mubr.bf16.mxu0 %v180
    %479 = vmatmul.mubr.bf16.gmra.mrb[0].mxu0 %v179
    %v480 = vpop.f32.mrb[0].mxu0
    %v481 = vadd.f32 %v252, %v480
    %v482 = vpop.f32.mrb[0].mxu0
    %v483 = vpop.f32.mrb[0].mxu0
    %v484 = vpop.f32.mrb[0].mxu0
    %485 = vdwg.mxu0
    %486 = vmatprep.subr.bf16.mxu0 0
    %487 = vmatpush1.bf16.msra.mxu0 %v398
    %488 = vmatprep.subr.bf16.mxu0 0
    %489 = vmatpush1.bf16.msra.mxu0 %v399
    %490 = vmatprep.subr.bf16.mxu0 0
    %491 = vmatpush1.bf16.msra.mxu0 %v400
    %492 = vmatprep.subr.bf16.mxu0 0
    %493 = vmatpush1.bf16.msra.mxu0 %v401
    %494 = vmatprep.subr.bf16.mxu0 0
    %495 = vmatpush1.bf16.msra.mxu0 %v402
    %496 = vmatprep.subr.bf16.mxu0 0
    %497 = vmatpush1.bf16.msra.mxu0 %v403
    %498 = vmatprep.subr.bf16.mxu0 0
    %499 = vmatpush1.bf16.msra.mxu0 %v404
    %500 = vmatprep.subr.bf16.mxu0 0
    %501 = vmatpush1.bf16.msra.mxu0 %v405
    %502 = vmatprep.subr.bf16.mxu0 0
    %503 = vmatpush1.bf16.msra.mxu0 %v406
    %504 = vmatprep.subr.bf16.mxu0 0
    %505 = vmatpush1.bf16.msra.mxu0 %v407
    %506 = vmatprep.subr.bf16.mxu0 0
    %507 = vmatpush1.bf16.msra.mxu0 %v408
    %508 = vmatprep.subr.bf16.mxu0 0
    %509 = vmatpush1.bf16.msra.mxu0 %v409
    %510 = vmatprep.subr.bf16.mxu0 0
    %511 = vmatpush1.bf16.msra.mxu0 %v410
    %512 = vmatprep.subr.bf16.mxu0 0
    %513 = vmatpush1.bf16.msra.mxu0 %v411
    %514 = vmatprep.subr.bf16.mxu0 0
    %515 = vmatpush1.bf16.msra.mxu0 %v412
    %516 = vmatprep.subr.bf16.mxu0 0
    %517 = vmatpush1.bf16.msra.mxu0 %v413
    %518 = vmatprep.mubr.bf16.mxu0 %v182
    %519 = vmatmul.mubr.bf16.gmra.mrb[0].mxu0 %v181
    %v520 = vpop.f32.mrb[0].mxu0
    %v521 = vadd.f32 %v481, %v520
    %v522 = vpop.f32.mrb[0].mxu0
    %v523 = vpop.f32.mrb[0].mxu0
    %v524 = vpop.f32.mrb[0].mxu0
    %525 = vdwg.mxu0
    %v526 = vmax.f32 %v521, 0.0
    %v527 = vpack.c.bf16 %v526, %v526
    %v528 = vld [vmem:[%s5] sm:$0xf]
    %v529 = vld [vmem:[%s5 + $0x4] sm:$0xf]
    %v530 = vld [vmem:[%s5 + $0x8] sm:$0xf]
    %v531 = vld [vmem:[%s5 + $0xc] sm:$0xf]
    %v532 = vld [vmem:[%s5 + $0x10] sm:$0xf]
    %v533 = vld [vmem:[%s5 + $0x14] sm:$0xf]
    %v534 = vld [vmem:[%s5 + $0x18] sm:$0xf]
    %v535 = vld [vmem:[%s5 + $0x1c] sm:$0xf]
    %v536 = vld [vmem:[%s5 + $0x20] sm:$0xf]
    %v537 = vld [vmem:[%s5 + $0x24] sm:$0xf]
    %v538 = vld [vmem:[%s5 + $0x28] sm:$0xf]
    %v539 = vld [vmem:[%s5 + $0x2c] sm:$0xf]
    %v540 = vld [vmem:[%s5 + $0x30] sm:$0xf]
    %v541 = vld [vmem:[%s5 + $0x34] sm:$0xf]
    %v542 = vld [vmem:[%s5 + $0x38] sm:$0xf]
    %v543 = vld [vmem:[%s5 + $0x3c] sm:$0xf]
    %v544 = vld [vmem:[%s6] sm:$0x1]
    %v546 = vlaneseq
    %v547 = vshrl.u32 %v546, 7
    %v548 = vsub.s32 0, %v547
    %v549 = vrot.slane %v544, %v548
    %v567 = vunpack.c.l.b16 %v528
    %v568 = vunpack.c.l.b16 %v529
    %v569 = vunpack.c.l.b16 %v530
    %v570 = vunpack.c.l.b16 %v531
    %v571 = vunpack.c.l.b16 %v532
    %v572 = vunpack.c.l.b16 %v533
    %v573 = vunpack.c.l.b16 %v534
    %v574 = vunpack.c.l.b16 %v535
    %v575 = vunpack.c.l.b16 %v536
    %v576 = vunpack.c.l.b16 %v537
    %v577 = vunpack.c.l.b16 %v538
    %v578 = vunpack.c.l.b16 %v539
    %v579 = vunpack.c.l.b16 %v540
    %v580 = vunpack.c.l.b16 %v541
    %v581 = vunpack.c.l.b16 %v542
    %v582 = vunpack.c.l.b16 %v543
    %v583 = vpack.c.b16 %v568, %v567
    %v584 = vpack.c.b16 %v570, %v569
    %v585 = vpack.c.b16 %v572, %v571
    %v586 = vpack.c.b16 %v574, %v573
    %v587 = vpack.c.b16 %v576, %v575
    %v588 = vpack.c.b16 %v578, %v577
    %v589 = vpack.c.b16 %v580, %v579
    %v590 = vpack.c.b16 %v582, %v581
    %599 = vmatprep.subr.bf16.mxu0 0
    %600 = vmatpush1.bf16.msra.mxu0 %v583
    %601 = vmatprep.subr.bf16.mxu0 0
    %602 = vmatpush1.bf16.msra.mxu0 %v584
    %603 = vmatprep.subr.bf16.mxu0 0
    %604 = vmatpush1.bf16.msra.mxu0 %v585
    %605 = vmatprep.subr.bf16.mxu0 0
    %606 = vmatpush1.bf16.msra.mxu0 %v586
    %607 = vmatprep.subr.bf16.mxu0 0
    %608 = vmatpush1.bf16.msra.mxu0 %v587
    %609 = vmatprep.subr.bf16.mxu0 0
    %610 = vmatpush1.bf16.msra.mxu0 %v588
    %611 = vmatprep.subr.bf16.mxu0 0
    %612 = vmatpush1.bf16.msra.mxu0 %v589
    %613 = vmatprep.subr.bf16.mxu0 0
    %614 = vmatpush1.bf16.msra.mxu0 %v590
    %615 = vmatprep.subr.bf16.mxu0 0
    %616 = vmatpush1.bf16.msra.mxu0 0
    %617 = vmatprep.subr.bf16.mxu0 0
    %618 = vmatpush1.bf16.msra.mxu0 0
    %619 = vmatprep.subr.bf16.mxu0 0
    %620 = vmatpush1.bf16.msra.mxu0 0
    %621 = vmatprep.subr.bf16.mxu0 0
    %622 = vmatpush1.bf16.msra.mxu0 0
    %623 = vmatprep.subr.bf16.mxu0 0
    %624 = vmatpush1.bf16.msra.mxu0 0
    %625 = vmatprep.subr.bf16.mxu0 0
    %626 = vmatpush1.bf16.msra.mxu0 0
    %627 = vmatprep.subr.bf16.mxu0 0
    %628 = vmatpush1.bf16.msra.mxu0 0
    %629 = vmatprep.subr.bf16.mxu0 0
    %630 = vmatpush1.bf16.msra.mxu0 0
    %631 = vmatprep.mubr.bf16.mxu0 0
    %632 = vmatmul.mubr.bf16.gmra.mrb[0].mxu0 %v527
    %v633 = vpop.f32.mrb[0].mxu0
    %v634 = vadd.f32 %v549, %v633
    %v635 = vpop.f32.mrb[0].mxu0
    %v636 = vpop.f32.mrb[0].mxu0
    %v637 = vpop.f32.mrb[0].mxu0
    %638 = vdwg.mxu0
    %v639 = vtanh.pop %v634
    %v640 = vmul.f32 %v639, 0.5
    %641 = vst [vmem:[%s7] sm:$0xff] %v640
    // Predicated region
    $region34: #{deterministic_policy_forward.1} parent=1 // pred_check
      _
    $region35: #{deterministic_policy_forward.1} parent=1 // pred_check_branch
      %643 = sbr.rel (0) target = $region37
    $region36: #{deterministic_policy_forward.1} parent=1 // pred_region
      _
    $region37: #{deterministic_policy_forward.1} parent=1 // pred_fallthru
      _
    // Predicated region
    $region38: #{deterministic_policy_forward.1} parent=1 // pred_check
      _
    $region39: #{deterministic_policy_forward.1} parent=1 // pred_check_branch
      %645 = sbr.rel (0) target = $region41
    $region40: #{deterministic_policy_forward.1} parent=1 // pred_region
      _
    $region41: #{deterministic_policy_forward.1} parent=1 // pred_fallthru
      _
    %646 = vsyncpa [#allocation3], 1

</llo_original>
